<compile_context>
chip_gen: v5e
topology: v5e:2x2
jax: 0.10.0
libtpu: 0.0.40
codegen_flags: <defaults>
</compile_context>

<pallas_src>
import jax
import jax.numpy as jnp
from jax import lax
from jax.experimental import pallas as pl
from jax.experimental.pallas import tpu as pltpu

MIB = 1024 * 1024


def _round_up(x, m):
    return ((x + m - 1) // m) * m


def _tpu_generation():
    """Best-effort TPU generation from the device kind string."""
    try:
        kind = jax.devices()[0].device_kind.lower()
    except Exception:
        return 6
    for g in (7, 6, 5, 4):
        if f"v{g}" in kind or f"tpu{g}" in kind:
            return g
    return 6


def _vmem_capacity_bytes(gen):
    try:
        info = pltpu.get_tpu_info()
        cap = getattr(info, "vmem_capacity_bytes", None)
        if cap:
            return int(cap)
    except Exception:
        pass
    return (64 if gen >= 7 else 128) * MIB


# --------------------------------------------------------------------------- #
# One-time parameter preparation (do this OUTSIDE the per-call hot path).
# --------------------------------------------------------------------------- #
def prepare_params(params, *, matmul_dtype=jnp.bfloat16, activation_dtype=None,
                   hidden_align=None):
    """Cast/pad PyTorch-layout (out_features, in_features) params once.

    Returns a tuple of (w, b_col) per layer:
      w     : (out_p, in_p) in matmul_dtype, hidden dims zero-padded to the
              MXU tile (256 on v6e/v7x, 128 on v5e) when >= that tile.
      b_col : (out_p, 1); activation dtype for hidden layers (bf16 on v6e/v7x,
              f32 on v5e), f32 for the final layer.
    """
    gen = _tpu_generation()
    if activation_dtype is None:
        activation_dtype = jnp.bfloat16 if gen >= 6 else jnp.float32
    if hidden_align is None:
        hidden_align = 256 if gen >= 6 else 128

    num_layers = len(params)
    dims = [params[0][0].shape[1]] + [w.shape[0] for (w, _) in params]
    pdims = list(dims)
    for i in range(1, num_layers):                       # hidden dims only
        d = dims[i]
        pdims[i] = _round_up(d, hidden_align) if d >= hidden_align else d

    prepared = []
    for li, (w, b) in enumerate(params):
        out_d, in_d = w.shape
        pout, pin = pdims[li + 1], pdims[li]
        wp = w
        if (pout, pin) != (out_d, in_d):
            wp = jnp.zeros((pout, pin), w.dtype).at[:out_d, :in_d].set(w)
        bp = b
        if pout != out_d:
            bp = jnp.zeros((pout,), b.dtype).at[:out_d].set(b)
        bias_dtype = jnp.float32 if li == num_layers - 1 else activation_dtype
        prepared.append((wp.astype(matmul_dtype),
                         bp.astype(bias_dtype).reshape(-1, 1)))
    return tuple(prepared)


# --------------------------------------------------------------------------- #
# Kernel
# --------------------------------------------------------------------------- #
def _make_mlp_kernel(num_layers, act_dtype):
    """refs = (x_tile, w0, b0, ..., w_{L-1}, b_{L-1}, out_tile)."""

    def kernel(*refs):
        x_ref, o_ref = refs[0], refs[-1]
        wb = refs[1:-1]

        w0_ref, b0_ref = wb[0], wb[1]
        # Layer 0: contract the shared minor feature axis (in-kernel transpose),
        # feature-major result (out0, batch_tile), f32 MXU accumulation.
        h = lax.dot_general(
            w0_ref[...], x_ref[...].astype(w0_ref.dtype),
            dimension_numbers=(((1,), (1,)), ((), ())),
            preferred_element_type=jnp.float32)

        if num_layers > 1:
            h = jnp.maximum(h.astype(act_dtype) + b0_ref[...], 0)
            for li in range(1, num_layers):
                w_ref, b_ref = wb[2 * li], wb[2 * li + 1]
                h = jnp.dot(w_ref[...], h.astype(w_ref.dtype),
                            preferred_element_type=jnp.float32)
                if li < num_layers - 1:
                    h = jnp.maximum(h.astype(act_dtype) + b_ref[...], 0)
                else:
                    h = h + b_ref[...]                    # final bias add in f32
        else:
            h = h + b0_ref[...]

        o_ref[...] = h.astype(o_ref.dtype)                # lane-dense (out, bt) store

    return kernel


# --------------------------------------------------------------------------- #
# Wrapper
# --------------------------------------------------------------------------- #
def base_reward_model_forward(state, prepared_params, *, batch_tile=None):
    """Forward pass of BaseRewardModel.

    state:           (B, state_dim)
    prepared_params: output of prepare_params()
    returns (B,) when output_dim == 1 (matching `.squeeze(-1)`), else (B, out).
    """
    layers = tuple(prepared_params)
    num_layers = len(layers)
    B, state_dim = state.shape
    assert layers[0][0].shape[1] == state_dim, "state_dim mismatch with params"
    output_dim = layers[-1][0].shape[0]
    hidden_max = max(w.shape[0] for w, _ in layers)
    act_dtype = layers[0][1].dtype if num_layers > 1 else jnp.float32
    out_dtype = state.dtype

    gen = _tpu_generation()
    vmem_cap = _vmem_capacity_bytes(gen)
    budget = min(vmem_cap - 8 * MIB, 100 * MIB)           # headroom: ~56 MiB v7x, ~100 MiB v5e/v6e

    # ---- batch tile: lane axis, multiple of 128, generation-aware ----
    if batch_tile is None:
        batch_tile = 1024 if gen >= 7 else 2048
    bt = _round_up(max(int(batch_tile), 128), 128)
    if gen >= 7 and B > 128:
        # v7x has 2 TensorCores: keep >= 2 grid steps so the parallel axis shards.
        bt = min(bt, _round_up(pl.cdiv(B, 2), 128))
    bt = min(bt, _round_up(B, 128))

    # ---- VMEM footprint (weights single-buffered, x/out double-buffered) ----
    x_itemsize = jnp.dtype(state.dtype).itemsize
    act_itemsize = jnp.dtype(act_dtype).itemsize
    wb_vmem = 0
    wb_hbm = 0
    for (w, b) in layers:
        wb_vmem += w.size * w.dtype.itemsize + w.shape[0] * 128 * b.dtype.itemsize
        wb_hbm += w.size * w.dtype.itemsize + b.size * b.dtype.itemsize

    def est_vmem(bt_):
        x_tiles = 2 * bt_ * state_dim * x_itemsize
        o_tiles = 2 * max(output_dim, 8) * bt_ * jnp.dtype(out_dtype).itemsize
        acts = hidden_max * bt_ * (4 + act_itemsize)      # f32 accum + act copy
        return x_tiles + o_tiles + acts + wb_vmem

    while bt > 128 and est_vmem(bt) > budget:
        bt = max(128, _round_up(bt // 2, 128))
    # TODO(synk): if est_vmem(128) still exceeds the budget (hidden >~ 4k bf16 on
    # v7x), stream W1/W2 in k-chunks (pltpu.emit_pipeline / extra grid axis)
    # instead of holding them fully resident.

    Bp = _round_up(B, bt)
    grid = (Bp // bt,)

    x = state
    if Bp != B:
        x = jnp.pad(x, ((0, Bp - B), (0, 0)))

    wb_args = []
    for (w, b) in layers:
        wb_args += [w, b]

    def _resident_spec(arr):
        nd = arr.ndim
        # Constant index map -> never re-DMA'd; single-buffer it (no wasted VMEM).
        return pl.BlockSpec(arr.shape, lambda i, _nd=nd: (0,) * _nd,
                            pipeline_mode=pl.Buffered(1))

    in_specs = [pl.BlockSpec((bt, state_dim), lambda i: (i, 0))]   # streamed x tile
    in_specs += [_resident_spec(a) for a in wb_args]               # resident weights
    out_specs = pl.BlockSpec((output_dim, bt), lambda i: (0, i))   # lane-dense output

    # ---- advisory cost estimate ----
    dims = [state_dim] + [w.shape[0] for w, _ in layers]
    flops = 2 * Bp * sum(dims[i] * dims[i + 1] for i in range(num_layers))
    bytes_accessed = int(Bp * state_dim * x_itemsize + wb_hbm
                         + Bp * output_dim * jnp.dtype(out_dtype).itemsize)
    cost = pl.CostEstimate(flops=int(flops), transcendentals=0,
                           bytes_accessed=bytes_accessed)

    cp_kwargs = dict(dimension_semantics=("parallel",))
    need = est_vmem(bt)
    if need > 12 * MIB:
        cp_kwargs["vmem_limit_bytes"] = int(
            min(budget, max(32 * MIB, _round_up(need * 5 // 4, MIB))))

    out = pl.pallas_call(
        _make_mlp_kernel(num_layers, act_dtype),
        out_shape=jax.ShapeDtypeStruct((output_dim, Bp), out_dtype),
        grid_spec=pltpu.PrefetchScalarGridSpec(
            num_scalar_prefetch=0,
            grid=grid,
            in_specs=in_specs,
            out_specs=out_specs,
        ),
        compiler_params=pltpu.CompilerParams(**cp_kwargs),
        cost_estimate=cost,
    )(x, *wb_args)

    res = out[:, :B].T                                    # (B, output_dim)
    if output_dim == 1:
        res = jnp.squeeze(res, axis=-1)                   # matches `.squeeze(-1)`
    return res


# --------------------------------------------------------------------------- #
# Init + references
# --------------------------------------------------------------------------- #
def init_params(key, state_dim, hidden_dim, output_dim, num_layers=4,
                dtype=jnp.float32):
    """PyTorch-style init, weights in PyTorch layout (out_features, in_features)."""
    dims = [state_dim] + [hidden_dim] * (num_layers - 1) + [output_dim]
    params = []
    for li in range(num_layers):
        fan_in, fan_out = dims[li], dims[li + 1]
        key, kw, kb = jax.random.split(key, 3)
        bound = 1.0 / (fan_in ** 0.5)
        w = jax.random.uniform(kw, (fan_out, fan_in), dtype, -bound, bound)
        b = jax.random.uniform(kb, (fan_out,), dtype, -bound, bound)
        params.append((w, b))
    return params


def reference_forward(state, prepared_params):
    """Pure-JAX reference mirroring the kernel numerics exactly (feature-major)."""
    layers = tuple(prepared_params)
    num_layers = len(layers)
    act_dtype = layers[0][1].dtype if num_layers > 1 else jnp.float32
    output_dim = layers[-1][0].shape[0]

    w0, b0 = layers[0]
    h = lax.dot_general(w0, state.astype(w0.dtype),
                        dimension_numbers=(((1,), (1,)), ((), ())),
                        preferred_element_type=jnp.float32)
    if num_layers > 1:
        h = jnp.maximum(h.astype(act_dtype) + b0, 0)
        for li in range(1, num_layers):
            w, b = layers[li]
            h = jnp.dot(w, h.astype(w.dtype), preferred_element_type=jnp.float32)
            if li < num_layers - 1:
                h = jnp.maximum(h.astype(act_dtype) + b, 0)
            else:
                h = h + b
    else:
        h = h + b0
    res = h.astype(state.dtype).T
    return jnp.squeeze(res, axis=-1) if output_dim == 1 else res


def reference_forward_f32(state, raw_params):
    """Pure-f32 PyTorch-style semantics (loose check of module fidelity)."""
    h = state.astype(jnp.float32)
    n = len(raw_params)
    for li, (w, b) in enumerate(raw_params):
        h = h @ w.astype(jnp.float32).T + b.astype(jnp.float32)
        if li < n - 1:
            h = jnp.maximum(h, 0.0)
    return jnp.squeeze(h, axis=-1) if h.shape[-1] == 1 else h


if __name__ == "__main__":
    # Small shapes consistent with the module's forward.
    B, STATE_DIM, HIDDEN_DIM, OUTPUT_DIM, NUM_LAYERS = 16, 16, 32, 1, 4

    key = jax.random.PRNGKey(0)
    key, kx = jax.random.split(key)
    state = jax.random.normal(kx, (B, STATE_DIM), dtype=jnp.float32)
    raw_params = init_params(key, STATE_DIM, HIDDEN_DIM, OUTPUT_DIM, NUM_LAYERS)

    # One-time parameter preparation (bf16 weights, lane-shaped biases, MXU padding).
    prepared = prepare_params(raw_params)

    fwd = jax.jit(base_reward_model_forward, static_argnames=("batch_tile",))
    out = jax.block_until_ready(fwd(state, prepared))

    assert out.shape == (B,), out.shape

    ref = reference_forward(state, prepared)
    assert jnp.allclose(out, ref, atol=1e-2, rtol=1e-2), \
        float(jnp.max(jnp.abs(out - ref)))

    # Loose semantic check against pure-f32 PyTorch-style math.
    ref32 = reference_forward_f32(state, raw_params)
    assert jnp.allclose(out, ref32, atol=2e-1, rtol=2e-1), \
        float(jnp.max(jnp.abs(out - ref32)))

    print("KERNEL_OK")
</pallas_src>

<mosaic_0001>
module attributes {stable_mosaic.version = 11 : i64} {
  func.func @kernel(%arg0: i32, %arg1: memref<128x16xf32, #tpu.memory_space<vmem>>, %arg2: memref<32x16xbf16, #tpu.memory_space<vmem>>, %arg3: memref<32x1xbf16, #tpu.memory_space<vmem>>, %arg4: memref<32x32xbf16, #tpu.memory_space<vmem>>, %arg5: memref<32x1xbf16, #tpu.memory_space<vmem>>, %arg6: memref<32x32xbf16, #tpu.memory_space<vmem>>, %arg7: memref<32x1xbf16, #tpu.memory_space<vmem>>, %arg8: memref<1x32xbf16, #tpu.memory_space<vmem>>, %arg9: memref<1x1xf32, #tpu.memory_space<vmem>>, %arg10: memref<1x128xf32, #tpu.memory_space<vmem>>) attributes {dimension_semantics = [#tpu.dimension_semantics<parallel>], iteration_bounds = array<i64: 1>, scalar_prefetch = 0 : i64, scratch_operands = 0 : i64, tpu.core_type = #tpu.core_type<tc>, window_params = [{transform_indices = @transform_0, window_bounds = array<i64: 128, 16>}, {pipeline_mode = #tpu.pipeline_mode<synchronous>, transform_indices = @transform_1, window_bounds = array<i64: 32, 16>}, {pipeline_mode = #tpu.pipeline_mode<synchronous>, transform_indices = @transform_2, window_bounds = array<i64: 32, 1>}, {pipeline_mode = #tpu.pipeline_mode<synchronous>, transform_indices = @transform_3, window_bounds = array<i64: 32, 32>}, {pipeline_mode = #tpu.pipeline_mode<synchronous>, transform_indices = @transform_4, window_bounds = array<i64: 32, 1>}, {pipeline_mode = #tpu.pipeline_mode<synchronous>, transform_indices = @transform_5, window_bounds = array<i64: 32, 32>}, {pipeline_mode = #tpu.pipeline_mode<synchronous>, transform_indices = @transform_6, window_bounds = array<i64: 32, 1>}, {pipeline_mode = #tpu.pipeline_mode<synchronous>, transform_indices = @transform_7, window_bounds = array<i64: 1, 32>}, {pipeline_mode = #tpu.pipeline_mode<synchronous>, transform_indices = @transform_8, window_bounds = array<i64: 1, 1>}, {transform_indices = @transform_9, window_bounds = array<i64: 1, 128>}]} {
    %c0 = arith.constant 0 : index
    %c0_0 = arith.constant 0 : index
    %0 = vector.load %arg2[%c0, %c0_0] : memref<32x16xbf16, #tpu.memory_space<vmem>>, vector<32x16xbf16>
    %c0_1 = arith.constant 0 : index
    %c0_2 = arith.constant 0 : index
    %1 = vector.load %arg1[%c0_1, %c0_2] : memref<128x16xf32, #tpu.memory_space<vmem>>, vector<128x16xf32>
    %2 = arith.truncf %1 : vector<128x16xf32> to vector<128x16xbf16>
    %cst = arith.constant dense<0.000000e+00> : vector<32x128xf32>
    %3 = tpu.matmul %0, %2, %cst {dimension_numbers = #tpu.dot_dimension_numbers<[1], [1], [0], [0], [0, 0, 1, 0], [], []>} : vector<32x16xbf16>, vector<128x16xbf16>, vector<32x128xf32> -> vector<32x128xf32>
    %4 = arith.truncf %3 : vector<32x128xf32> to vector<32x128xbf16>
    %c0_3 = arith.constant 0 : index
    %c0_4 = arith.constant 0 : index
    %5 = vector.load %arg3[%c0_3, %c0_4] : memref<32x1xbf16, #tpu.memory_space<vmem>>, vector<32x1xbf16>
    %6 = vector.broadcast %5 : vector<32x1xbf16> to vector<32x128xbf16>
    %7 = arith.addf %4, %6 : vector<32x128xbf16>
    %cst_5 = arith.constant 0.000000e+00 : bf16
    %8 = vector.broadcast %cst_5 : bf16 to vector<32x128xbf16>
    %9 = arith.maximumf %7, %8 : vector<32x128xbf16>
    %c0_6 = arith.constant 0 : index
    %c0_7 = arith.constant 0 : index
    %10 = vector.load %arg4[%c0_6, %c0_7] : memref<32x32xbf16, #tpu.memory_space<vmem>>, vector<32x32xbf16>
    %cst_8 = arith.constant dense<0.000000e+00> : vector<32x128xf32>
    %11 = tpu.matmul %10, %9, %cst_8 {dimension_numbers = #tpu.dot_dimension_numbers<[1], [0], [0], [1], [0, 0, 1, 1], [], []>} : vector<32x32xbf16>, vector<32x128xbf16>, vector<32x128xf32> -> vector<32x128xf32>
    %12 = arith.truncf %11 : vector<32x128xf32> to vector<32x128xbf16>
    %c0_9 = arith.constant 0 : index
    %c0_10 = arith.constant 0 : index
    %13 = vector.load %arg5[%c0_9, %c0_10] : memref<32x1xbf16, #tpu.memory_space<vmem>>, vector<32x1xbf16>
    %14 = vector.broadcast %13 : vector<32x1xbf16> to vector<32x128xbf16>
    %15 = arith.addf %12, %14 : vector<32x128xbf16>
    %cst_11 = arith.constant 0.000000e+00 : bf16
    %16 = vector.broadcast %cst_11 : bf16 to vector<32x128xbf16>
    %17 = arith.maximumf %15, %16 : vector<32x128xbf16>
    %c0_12 = arith.constant 0 : index
    %c0_13 = arith.constant 0 : index
    %18 = vector.load %arg6[%c0_12, %c0_13] : memref<32x32xbf16, #tpu.memory_space<vmem>>, vector<32x32xbf16>
    %cst_14 = arith.constant dense<0.000000e+00> : vector<32x128xf32>
    %19 = tpu.matmul %18, %17, %cst_14 {dimension_numbers = #tpu.dot_dimension_numbers<[1], [0], [0], [1], [0, 0, 1, 1], [], []>} : vector<32x32xbf16>, vector<32x128xbf16>, vector<32x128xf32> -> vector<32x128xf32>
    %20 = arith.truncf %19 : vector<32x128xf32> to vector<32x128xbf16>
    %c0_15 = arith.constant 0 : index
    %c0_16 = arith.constant 0 : index
    %21 = vector.load %arg7[%c0_15, %c0_16] : memref<32x1xbf16, #tpu.memory_space<vmem>>, vector<32x1xbf16>
    %22 = vector.broadcast %21 : vector<32x1xbf16> to vector<32x128xbf16>
    %23 = arith.addf %20, %22 : vector<32x128xbf16>
    %cst_17 = arith.constant 0.000000e+00 : bf16
    %24 = vector.broadcast %cst_17 : bf16 to vector<32x128xbf16>
    %25 = arith.maximumf %23, %24 : vector<32x128xbf16>
    %c0_18 = arith.constant 0 : index
    %c0_19 = arith.constant 0 : index
    %26 = vector.load %arg8[%c0_18, %c0_19] : memref<1x32xbf16, #tpu.memory_space<vmem>>, vector<1x32xbf16>
    %cst_20 = arith.constant dense<0.000000e+00> : vector<1x128xf32>
    %27 = tpu.matmul %26, %25, %cst_20 {dimension_numbers = #tpu.dot_dimension_numbers<[1], [0], [0], [1], [0, 0, 1, 1], [], []>} : vector<1x32xbf16>, vector<32x128xbf16>, vector<1x128xf32> -> vector<1x128xf32>
    %c0_21 = arith.constant 0 : index
    %c0_22 = arith.constant 0 : index
    %28 = vector.load %arg9[%c0_21, %c0_22] : memref<1x1xf32, #tpu.memory_space<vmem>>, vector<1x1xf32>
    %29 = vector.broadcast %28 : vector<1x1xf32> to vector<1x128xf32>
    %30 = arith.addf %27, %29 : vector<1x128xf32>
    %c0_23 = arith.constant 0 : index
    %c0_24 = arith.constant 0 : index
    %31 = vector.load %arg10[%c0_23, %c0_24] : memref<1x128xf32, #tpu.memory_space<vmem>>, vector<1x128xf32>
    tpu.vector_store %arg10[%c0_23, %c0_24], %30 {strides = array<i32>} : memref<1x128xf32, #tpu.memory_space<vmem>>, vector<1x128xf32>,
    return
  }
  func.func @transform_0(%arg0: i32) -> (i32, i32) {
    %c0_i32 = arith.constant 0 : i32
    %c0_i32_0 = arith.constant 0 : i32
    return %arg0, %c0_i32 : i32, i32
  }
  func.func @transform_1(%arg0: i32) -> (i32, i32) {
    %c0_i32 = arith.constant 0 : i32
    %c0_i32_0 = arith.constant 0 : i32
    %c0_i32_1 = arith.constant 0 : i32
    return %c0_i32, %c0_i32_0 : i32, i32
  }
  func.func @transform_2(%arg0: i32) -> (i32, i32) {
    %c0_i32 = arith.constant 0 : i32
    %c0_i32_0 = arith.constant 0 : i32
    %c0_i32_1 = arith.constant 0 : i32
    return %c0_i32, %c0_i32_0 : i32, i32
  }
  func.func @transform_3(%arg0: i32) -> (i32, i32) {
    %c0_i32 = arith.constant 0 : i32
    %c0_i32_0 = arith.constant 0 : i32
    %c0_i32_1 = arith.constant 0 : i32
    return %c0_i32, %c0_i32_0 : i32, i32
  }
  func.func @transform_4(%arg0: i32) -> (i32, i32) {
    %c0_i32 = arith.constant 0 : i32
    %c0_i32_0 = arith.constant 0 : i32
    %c0_i32_1 = arith.constant 0 : i32
    return %c0_i32, %c0_i32_0 : i32, i32
  }
  func.func @transform_5(%arg0: i32) -> (i32, i32) {
    %c0_i32 = arith.constant 0 : i32
    %c0_i32_0 = arith.constant 0 : i32
    %c0_i32_1 = arith.constant 0 : i32
    return %c0_i32, %c0_i32_0 : i32, i32
  }
  func.func @transform_6(%arg0: i32) -> (i32, i32) {
    %c0_i32 = arith.constant 0 : i32
    %c0_i32_0 = arith.constant 0 : i32
    %c0_i32_1 = arith.constant 0 : i32
    return %c0_i32, %c0_i32_0 : i32, i32
  }
  func.func @transform_7(%arg0: i32) -> (i32, i32) {
    %c0_i32 = arith.constant 0 : i32
    %c0_i32_0 = arith.constant 0 : i32
    %c0_i32_1 = arith.constant 0 : i32
    return %c0_i32, %c0_i32_0 : i32, i32
  }
  func.func @transform_8(%arg0: i32) -> (i32, i32) {
    %c0_i32 = arith.constant 0 : i32
    %c0_i32_0 = arith.constant 0 : i32
    %c0_i32_1 = arith.constant 0 : i32
    return %c0_i32, %c0_i32_0 : i32, i32
  }
  func.func @transform_9(%arg0: i32) -> (i32, i32) {
    %c0_i32 = arith.constant 0 : i32
    %c0_i32_0 = arith.constant 0 : i32
    return %c0_i32, %arg0 : i32, i32
  }
}

</mosaic_0001>

<llo_original>
// kernel: base_reward_model_forward.1
$region0: #{base_reward_model_forward.1}
  #allocation0 [shape = 'u32[]', space=smem, size = 0x4, offset = 0x4, fixed_abs, tag = 'smem constant byte address 0x4 - core index']
  #allocation1 [shape = 'u32[72,128]{1,0:T(1,128)}', space=vmem, size = 0x9000, scoped, tag = 'internal scratch']
  #allocation2 [shape = 'f32[1,1]{1,0:T(1,128)S(1)}', space=vmem, size = 0x200, scoped, tag = 'scoped memory for base_reward_model_forward.1']
  %s0 = inlined_call_operand.vmem [shape: f32[128,16], index: 0, kind: input, shape index: {}]
  %s1 = inlined_call_operand.vmem [shape: bf16[32,16], index: 1, kind: input, shape index: {}]
  %s2 = inlined_call_operand.vmem [shape: bf16[32,1], index: 2, kind: input, shape index: {}]
  %s3 = inlined_call_operand.vmem [shape: bf16[32,32], index: 3, kind: input, shape index: {}]
  %s4 = inlined_call_operand.vmem [shape: bf16[32,1], index: 4, kind: input, shape index: {}]
  %s5 = inlined_call_operand.vmem [shape: bf16[32,32], index: 5, kind: input, shape index: {}]
  %s6 = inlined_call_operand.vmem [shape: bf16[32,1], index: 6, kind: input, shape index: {}]
  %s7 = inlined_call_operand.vmem [shape: bf16[1,32], index: 7, kind: input, shape index: {}]
  %s8 = inlined_call_operand.<no memory space> [shape: f32[1,1], index: 8, kind: input, shape index: {}]
  %s9 = inlined_call_operand.vmem [shape: f32[1,128], index: 9, kind: output, shape index: {}]
  %s10 = sld [smem:[#allocation0]]
  $region46: #{base_reward_model_forward.1} parent=0
    _
  %s12 = ssub.s32 1, %s10
  %s13 = scalar_select 0, %s12, %s10
  %v14 = vstv %s8
  %15 = vst [vmem:[#allocation2] sm:$0x1] %v14
  // Predicated region
  $region2: #{base_reward_model_forward.1} parent=0 // pred_check
    _
  $region3: #{base_reward_model_forward.1} parent=0 // pred_check_branch
    %17 = sbr.rel (0) target = $region5
  $region4: #{base_reward_model_forward.1} parent=0 // pred_region
    _
  $region5: #{base_reward_model_forward.1} parent=0 // pred_fallthru
    _
  // Predicated region
  $region6: #{base_reward_model_forward.1} parent=0 // pred_check
    _
  $region7: #{base_reward_model_forward.1} parent=0 // pred_check_branch
    %19 = sbr.rel (0) target = $region9
  $region8: #{base_reward_model_forward.1} parent=0 // pred_region
    _
  $region9: #{base_reward_model_forward.1} parent=0 // pred_fallthru
    _
  // Predicated region
  $region10: #{base_reward_model_forward.1} parent=0 // pred_check
    _
  $region11: #{base_reward_model_forward.1} parent=0 // pred_check_branch
    %21 = sbr.rel (0) target = $region13
  $region12: #{base_reward_model_forward.1} parent=0 // pred_region
    _
  $region13: #{base_reward_model_forward.1} parent=0 // pred_fallthru
    _
  // Predicated region
  $region14: #{base_reward_model_forward.1} parent=0 // pred_check
    _
  $region15: #{base_reward_model_forward.1} parent=0 // pred_check_branch
    %23 = sbr.rel (0) target = $region17
  $region16: #{base_reward_model_forward.1} parent=0 // pred_region
    _
  $region17: #{base_reward_model_forward.1} parent=0 // pred_fallthru
    _
  // Predicated region
  $region18: #{base_reward_model_forward.1} parent=0 // pred_check
    _
  $region19: #{base_reward_model_forward.1} parent=0 // pred_check_branch
    %25 = sbr.rel (0) target = $region21
  $region20: #{base_reward_model_forward.1} parent=0 // pred_region
    _
  $region21: #{base_reward_model_forward.1} parent=0 // pred_fallthru
    _
  // Predicated region
  $region22: #{base_reward_model_forward.1} parent=0 // pred_check
    _
  $region23: #{base_reward_model_forward.1} parent=0 // pred_check_branch
    %27 = sbr.rel (0) target = $region25
  $region24: #{base_reward_model_forward.1} parent=0 // pred_region
    _
  $region25: #{base_reward_model_forward.1} parent=0 // pred_fallthru
    _
  // Predicated region
  $region26: #{base_reward_model_forward.1} parent=0 // pred_check
    _
  $region27: #{base_reward_model_forward.1} parent=0 // pred_check_branch
    %29 = sbr.rel (0) target = $region29
  $region28: #{base_reward_model_forward.1} parent=0 // pred_region
    _
  $region29: #{base_reward_model_forward.1} parent=0 // pred_fallthru
    _
  // Predicated region
  $region30: #{base_reward_model_forward.1} parent=0 // pred_check
    _
  $region31: #{base_reward_model_forward.1} parent=0 // pred_check_branch
    %31 = sbr.rel (0) target = $region33
  $region32: #{base_reward_model_forward.1} parent=0 // pred_region
    _
  $region33: #{base_reward_model_forward.1} parent=0 // pred_fallthru
    _
  // Predicated region
  $region34: #{base_reward_model_forward.1} parent=0 // pred_check
    _
  $region35: #{base_reward_model_forward.1} parent=0 // pred_check_branch
    %33 = sbr.rel (0) target = $region37
  $region36: #{base_reward_model_forward.1} parent=0 // pred_region
    _
  $region37: #{base_reward_model_forward.1} parent=0 // pred_fallthru
    _
  %v35 = vld [vmem:[%s1] sm:$0xf]
  %v36 = vld [vmem:[%s1 + $0x4] sm:$0xf]
  %v37 = vld [vmem:[%s1 + $0x8] sm:$0xf]
  %v38 = vld [vmem:[%s1 + $0xc] sm:$0xf]
  %v39 = vld [vmem:[%s0] sm:$0xff]
  %v40 = vld [vmem:[%s0 + $0x8] sm:$0xff]
  %v41 = vld [vmem:[%s0 + $0x10] sm:$0xff]
  %v42 = vld [vmem:[%s0 + $0x18] sm:$0xff]
  %v43 = vld [vmem:[%s0 + $0x20] sm:$0xff]
  %v44 = vld [vmem:[%s0 + $0x28] sm:$0xff]
  %v45 = vld [vmem:[%s0 + $0x30] sm:$0xff]
  %v46 = vld [vmem:[%s0 + $0x38] sm:$0xff]
  %v47 = vld [vmem:[%s0 + $0x40] sm:$0xff]
  %v48 = vld [vmem:[%s0 + $0x48] sm:$0xff]
  %v49 = vld [vmem:[%s0 + $0x50] sm:$0xff]
  %v50 = vld [vmem:[%s0 + $0x58] sm:$0xff]
  %v51 = vld [vmem:[%s0 + $0x60] sm:$0xff]
  %v52 = vld [vmem:[%s0 + $0x68] sm:$0xff]
  %v53 = vld [vmem:[%s0 + $0x70] sm:$0xff]
  %v54 = vld [vmem:[%s0 + $0x78] sm:$0xff]
  %v55 = vpack.c.bf16 %v40, %v39
  %v56 = vpack.c.bf16 %v42, %v41
  %v57 = vpack.c.bf16 %v44, %v43
  %v58 = vpack.c.bf16 %v46, %v45
  %v59 = vpack.c.bf16 %v48, %v47
  %v60 = vpack.c.bf16 %v50, %v49
  %v61 = vpack.c.bf16 %v52, %v51
  %v62 = vpack.c.bf16 %v54, %v53
  %v67 = vunpack.c.l.b16 %v35
  %v68 = vunpack.c.l.b16 %v36
  %v69 = vunpack.c.l.b16 %v37
  %v70 = vunpack.c.l.b16 %v38
  %v71 = vpack.c.b16 %v68, %v67
  %v72 = vpack.c.b16 %v70, %v69
  %vm73 = vcmask 130048
  %v75 = vsel %vm73, %v71, 0
  %v78 = vsel %vm73, %v72, 0
  %v81 = vsel %vm73, %v55, 0
  %v84 = vsel %vm73, %v56, 0
  %v87 = vsel %vm73, %v57, 0
  %v90 = vsel %vm73, %v58, 0
  %v93 = vsel %vm73, %v59, 0
  %v96 = vsel %vm73, %v60, 0
  %v99 = vsel %vm73, %v61, 0
  %v102 = vsel %vm73, %v62, 0
  %104 = vmatpush.bf16.xpose.msra.mxu0 %v102
  %105 = vmatpush.bf16.xpose.msra.mxu0 %v99
  %106 = vmatpush.bf16.xpose.msra.mxu0 %v96
  %107 = vmatpush.bf16.xpose.msra.mxu0 %v93
  %108 = vmatpush.bf16.xpose.msra.mxu0 %v90
  %109 = vmatpush.bf16.xpose.msra.mxu0 %v87
  %110 = vmatpush.bf16.xpose.msra.mxu0 %v84
  %111 = vmatpush.bf16.xpose.msra.mxu0 %v81
  %112 = vmatmul.bf16.gmra.mxu0 %v75
  %v113 = vpop.f32.mrf.mxu0
  %v114 = vadd.f32 0.0, %v113
  %v115 = vpop.f32.mrf.mxu0
  %v116 = vadd.f32 0.0, %v115
  %117 = vmatmul.bf16.gmra.mxu0 %v78
  %v118 = vpop.f32.mrf.mxu0
  %v119 = vadd.f32 0.0, %v118
  %v120 = vpop.f32.mrf.mxu0
  %v121 = vadd.f32 0.0, %v120
  %122 = vdwg.mxu0
  %v123 = vpack.c.bf16 %v114, %v114
  %v124 = vpack.c.bf16 %v116, %v116
  %v125 = vpack.c.bf16 %v119, %v119
  %v126 = vpack.c.bf16 %v121, %v121
  %v127 = vld [vmem:[%s2] sm:$0xf]
  %v128 = vld [vmem:[%s2 + $0x4] sm:$0xf]
  %v129 = vld [vmem:[%s2 + $0x8] sm:$0xf]
  %v130 = vld [vmem:[%s2 + $0xc] sm:$0xf]
  %132 = vset.pattern.permute.xlu0 0
  %133 = vperm.xlu0 %132, %v127
  %v134 = vpop.permute.xlu0 %133
  %v137 = vunpack.c.l.s4 839922192
  %v138 = vunpack.c.0.s8 %v137
  %v139 = vperm.slane %v134, %v138
  %141 = vset.pattern.permute.xlu0 0
  %142 = vperm.xlu0 %141, %v128
  %v143 = vpop.permute.xlu0 %142
  %v146 = vunpack.c.l.s4 839922192
  %v147 = vunpack.c.0.s8 %v146
  %v148 = vperm.slane %v143, %v147
  %150 = vset.pattern.permute.xlu0 0
  %151 = vperm.xlu0 %150, %v129
  %v152 = vpop.permute.xlu0 %151
  %v155 = vunpack.c.l.s4 839922192
  %v156 = vunpack.c.0.s8 %v155
  %v157 = vperm.slane %v152, %v156
  %159 = vset.pattern.permute.xlu0 0
  %160 = vperm.xlu0 %159, %v130
  %v161 = vpop.permute.xlu0 %160
  %v164 = vunpack.c.l.s4 839922192
  %v165 = vunpack.c.0.s8 %v164
  %v166 = vperm.slane %v161, %v165
  %v167 = vunpack.c.l.bf16 %v123
  %v168 = vunpack.c.l.bf16 %v124
  %v169 = vunpack.c.l.bf16 %v125
  %v170 = vunpack.c.l.bf16 %v126
  %v171 = vunpack.c.l.bf16 %v139
  %v172 = vunpack.c.l.bf16 %v148
  %v173 = vunpack.c.l.bf16 %v157
  %v174 = vunpack.c.l.bf16 %v166
  %v175 = vadd.f32 %v167, %v171
  %v176 = vadd.f32 %v168, %v172
  %v177 = vadd.f32 %v169, %v173
  %v178 = vadd.f32 %v170, %v174
  %v179 = vpack.c.bf16 %v175, %v175
  %v180 = vpack.c.bf16 %v176, %v176
  %v181 = vpack.c.bf16 %v177, %v177
  %v182 = vpack.c.bf16 %v178, %v178
  %v183 = vunpack.c.l.bf16 %v179
  %v184 = vunpack.c.l.bf16 %v180
  %v185 = vunpack.c.l.bf16 %v181
  %v186 = vunpack.c.l.bf16 %v182
  %v187 = vmax.f32 %v183, 0.0
  %v188 = vmax.f32 %v184, 0.0
  %v189 = vmax.f32 %v185, 0.0
  %v190 = vmax.f32 %v186, 0.0
  %v191 = vpack.c.bf16 %v188, %v187
  %v192 = vpack.c.bf16 %v190, %v189
  %v193 = vld [vmem:[%s3] sm:$0xf]
  %v194 = vld [vmem:[%s3 + $0x4] sm:$0xf]
  %v195 = vld [vmem:[%s3 + $0x8] sm:$0xf]
  %v196 = vld [vmem:[%s3 + $0xc] sm:$0xf]
  %v201 = vunpack.c.l.b16 %v193
  %v202 = vunpack.c.l.b16 %v194
  %v203 = vunpack.c.l.b16 %v195
  %v204 = vunpack.c.l.b16 %v196
  %v205 = vpack.c.b16 %v202, %v201
  %v206 = vpack.c.b16 %v204, %v203
  %vm207 = vcmask 261120
  %v209 = vsel %vm207, %v205, 0
  %v212 = vsel %vm207, %v206, 0
  %214 = vmatpush.bf16.msra.mxu0 0
  %215 = vmatpush.bf16.msra.mxu0 0
  %216 = vmatpush.bf16.msra.mxu0 0
  %217 = vmatpush.bf16.msra.mxu0 0
  %218 = vmatpush.bf16.msra.mxu0 0
  %219 = vmatpush.bf16.msra.mxu0 0
  %220 = vmatpush.bf16.msra.mxu0 %v192
  %221 = vmatpush.bf16.msra.mxu0 %v191
  %222 = vmatmul.bf16.gmra.mxu0 %v209
  %v223 = vpop.f32.mrf.mxu0
  %v224 = vadd.f32 0.0, %v223
  %v225 = vpop.f32.mrf.mxu0
  %v226 = vadd.f32 0.0, %v225
  %227 = vmatmul.bf16.gmra.mxu0 %v212
  %v228 = vpop.f32.mrf.mxu0
  %v229 = vadd.f32 0.0, %v228
  %v230 = vpop.f32.mrf.mxu0
  %v231 = vadd.f32 0.0, %v230
  %232 = vdwg.mxu0
  %v233 = vpack.c.bf16 %v224, %v224
  %v234 = vpack.c.bf16 %v226, %v226
  %v235 = vpack.c.bf16 %v229, %v229
  %v236 = vpack.c.bf16 %v231, %v231
  %v237 = vld [vmem:[%s4] sm:$0xf]
  %v238 = vld [vmem:[%s4 + $0x4] sm:$0xf]
  %v239 = vld [vmem:[%s4 + $0x8] sm:$0xf]
  %v240 = vld [vmem:[%s4 + $0xc] sm:$0xf]
  %242 = vset.pattern.permute.xlu0 0
  %243 = vperm.xlu0 %242, %v237
  %v244 = vpop.permute.xlu0 %243
  %v247 = vunpack.c.l.s4 839922192
  %v248 = vunpack.c.0.s8 %v247
  %v249 = vperm.slane %v244, %v248
  %251 = vset.pattern.permute.xlu0 0
  %252 = vperm.xlu0 %251, %v238
  %v253 = vpop.permute.xlu0 %252
  %v256 = vunpack.c.l.s4 839922192
  %v257 = vunpack.c.0.s8 %v256
  %v258 = vperm.slane %v253, %v257
  %260 = vset.pattern.permute.xlu0 0
  %261 = vperm.xlu0 %260, %v239
  %v262 = vpop.permute.xlu0 %261
  %v265 = vunpack.c.l.s4 839922192
  %v266 = vunpack.c.0.s8 %v265
  %v267 = vperm.slane %v262, %v266
  %269 = vset.pattern.permute.xlu0 0
  %270 = vperm.xlu0 %269, %v240
  %v271 = vpop.permute.xlu0 %270
  %v274 = vunpack.c.l.s4 839922192
  %v275 = vunpack.c.0.s8 %v274
  %v276 = vperm.slane %v271, %v275
  %v277 = vunpack.c.l.bf16 %v233
  %v278 = vunpack.c.l.bf16 %v234
  %v279 = vunpack.c.l.bf16 %v235
  %v280 = vunpack.c.l.bf16 %v236
  %v281 = vunpack.c.l.bf16 %v249
  %v282 = vunpack.c.l.bf16 %v258
  %v283 = vunpack.c.l.bf16 %v267
  %v284 = vunpack.c.l.bf16 %v276
  %v285 = vadd.f32 %v277, %v281
  %v286 = vadd.f32 %v278, %v282
  %v287 = vadd.f32 %v279, %v283
  %v288 = vadd.f32 %v280, %v284
  %v289 = vpack.c.bf16 %v285, %v285
  %v290 = vpack.c.bf16 %v286, %v286
  %v291 = vpack.c.bf16 %v287, %v287
  %v292 = vpack.c.bf16 %v288, %v288
  %v293 = vunpack.c.l.bf16 %v289
  %v294 = vunpack.c.l.bf16 %v290
  %v295 = vunpack.c.l.bf16 %v291
  %v296 = vunpack.c.l.bf16 %v292
  %v297 = vmax.f32 %v293, 0.0
  %v298 = vmax.f32 %v294, 0.0
  %v299 = vmax.f32 %v295, 0.0
  %v300 = vmax.f32 %v296, 0.0
  %v301 = vpack.c.bf16 %v298, %v297
  %v302 = vpack.c.bf16 %v300, %v299
  %v303 = vld [vmem:[%s5] sm:$0xf]
  %v304 = vld [vmem:[%s5 + $0x4] sm:$0xf]
  %v305 = vld [vmem:[%s5 + $0x8] sm:$0xf]
  %v306 = vld [vmem:[%s5 + $0xc] sm:$0xf]
  %v311 = vunpack.c.l.b16 %v303
  %v312 = vunpack.c.l.b16 %v304
  %v313 = vunpack.c.l.b16 %v305
  %v314 = vunpack.c.l.b16 %v306
  %v315 = vpack.c.b16 %v312, %v311
  %v316 = vpack.c.b16 %v314, %v313
  %v318 = vsel %vm207, %v315, 0
  %v321 = vsel %vm207, %v316, 0
  %323 = vmatpush.bf16.msra.mxu0 0
  %324 = vmatpush.bf16.msra.mxu0 0
  %325 = vmatpush.bf16.msra.mxu0 0
  %326 = vmatpush.bf16.msra.mxu0 0
  %327 = vmatpush.bf16.msra.mxu0 0
  %328 = vmatpush.bf16.msra.mxu0 0
  %329 = vmatpush.bf16.msra.mxu0 %v302
  %330 = vmatpush.bf16.msra.mxu0 %v301
  %331 = vmatmul.bf16.gmra.mxu0 %v318
  %v332 = vpop.f32.mrf.mxu0
  %v333 = vadd.f32 0.0, %v332
  %v334 = vpop.f32.mrf.mxu0
  %v335 = vadd.f32 0.0, %v334
  %336 = vmatmul.bf16.gmra.mxu0 %v321
  %v337 = vpop.f32.mrf.mxu0
  %v338 = vadd.f32 0.0, %v337
  %v339 = vpop.f32.mrf.mxu0
  %v340 = vadd.f32 0.0, %v339
  %341 = vdwg.mxu0
  %v342 = vpack.c.bf16 %v333, %v333
  %v343 = vpack.c.bf16 %v335, %v335
  %v344 = vpack.c.bf16 %v338, %v338
  %v345 = vpack.c.bf16 %v340, %v340
  %v346 = vld [vmem:[%s6] sm:$0xf]
  %v347 = vld [vmem:[%s6 + $0x4] sm:$0xf]
  %v348 = vld [vmem:[%s6 + $0x8] sm:$0xf]
  %v349 = vld [vmem:[%s6 + $0xc] sm:$0xf]
  %351 = vset.pattern.permute.xlu0 0
  %352 = vperm.xlu0 %351, %v346
  %v353 = vpop.permute.xlu0 %352
  %v356 = vunpack.c.l.s4 839922192
  %v357 = vunpack.c.0.s8 %v356
  %v358 = vperm.slane %v353, %v357
  %360 = vset.pattern.permute.xlu0 0
  %361 = vperm.xlu0 %360, %v347
  %v362 = vpop.permute.xlu0 %361
  %v365 = vunpack.c.l.s4 839922192
  %v366 = vunpack.c.0.s8 %v365
  %v367 = vperm.slane %v362, %v366
  %369 = vset.pattern.permute.xlu0 0
  %370 = vperm.xlu0 %369, %v348
  %v371 = vpop.permute.xlu0 %370
  %v374 = vunpack.c.l.s4 839922192
  %v375 = vunpack.c.0.s8 %v374
  %v376 = vperm.slane %v371, %v375
  %378 = vset.pattern.permute.xlu0 0
  %379 = vperm.xlu0 %378, %v349
  %v380 = vpop.permute.xlu0 %379
  %v383 = vunpack.c.l.s4 839922192
  %v384 = vunpack.c.0.s8 %v383
  %v385 = vperm.slane %v380, %v384
  %v386 = vunpack.c.l.bf16 %v342
  %v387 = vunpack.c.l.bf16 %v343
  %v388 = vunpack.c.l.bf16 %v344
  %v389 = vunpack.c.l.bf16 %v345
  %v390 = vunpack.c.l.bf16 %v358
  %v391 = vunpack.c.l.bf16 %v367
  %v392 = vunpack.c.l.bf16 %v376
  %v393 = vunpack.c.l.bf16 %v385
  %v394 = vadd.f32 %v386, %v390
  %v395 = vadd.f32 %v387, %v391
  %v396 = vadd.f32 %v388, %v392
  %v397 = vadd.f32 %v389, %v393
  %v398 = vpack.c.bf16 %v394, %v394
  %v399 = vpack.c.bf16 %v395, %v395
  %v400 = vpack.c.bf16 %v396, %v396
  %v401 = vpack.c.bf16 %v397, %v397
  %v402 = vunpack.c.l.bf16 %v398
  %v403 = vunpack.c.l.bf16 %v399
  %v404 = vunpack.c.l.bf16 %v400
  %v405 = vunpack.c.l.bf16 %v401
  %v406 = vmax.f32 %v402, 0.0
  %v407 = vmax.f32 %v403, 0.0
  %v408 = vmax.f32 %v404, 0.0
  %v409 = vmax.f32 %v405, 0.0
  %v410 = vpack.c.bf16 %v407, %v406
  %v411 = vpack.c.bf16 %v409, %v408
  %v412 = vld [vmem:[%s7] sm:$0x1]
  %v413 = vld [vmem:[#allocation2] sm:$0x1]
  %415 = vset.pattern.permute.xlu0 0
  %416 = vperm.xlu0 %415, %v413
  %v417 = vpop.permute.xlu0 %416
  %v419 = vperm.slane %v417, 0
  %v421 = vsel %vm207, %v412, 0
  %423 = vmatpush.bf16.msra.mxu0 0
  %424 = vmatpush.bf16.msra.mxu0 0
  %425 = vmatpush.bf16.msra.mxu0 0
  %426 = vmatpush.bf16.msra.mxu0 0
  %427 = vmatpush.bf16.msra.mxu0 0
  %428 = vmatpush.bf16.msra.mxu0 0
  %429 = vmatpush.bf16.msra.mxu0 %v411
  %430 = vmatpush.bf16.msra.mxu0 %v410
  %431 = vmatmul.bf16.gmra.mxu0 %v421
  %v432 = vpop.f32.mrf.mxu0
  %v433 = vadd.f32 %v419, %v432
  %v434 = vpop.f32.mrf.mxu0
  %435 = vdwg.mxu0
  %436 = vst [vmem:[%s9] sm:$0x1] %v433
  // Predicated region
  $region38: #{base_reward_model_forward.1} parent=0 // pred_check
    _
  $region39: #{base_reward_model_forward.1} parent=0 // pred_check_branch
    %438 = sbr.rel (0) target = $region41
  $region40: #{base_reward_model_forward.1} parent=0 // pred_region
    _
  $region41: #{base_reward_model_forward.1} parent=0 // pred_fallthru
    _
  // Predicated region
  $region42: #{base_reward_model_forward.1} parent=0 // pred_check
    _
  $region43: #{base_reward_model_forward.1} parent=0 // pred_check_branch
    %440 = sbr.rel (0) target = $region45
  $region44: #{base_reward_model_forward.1} parent=0 // pred_region
    _
  $region45: #{base_reward_model_forward.1} parent=0 // pred_fallthru
    _

</llo_original>
